<compile_context>
chip_gen: v7x
topology: tpu7x:2x2x1
jax: 0.10.0
libtpu: 0.0.40
codegen_flags: <defaults>
</compile_context>

<pallas_src>
import functools

import jax
import jax.numpy as jnp
from jax import lax
from jax.experimental import pallas as pl
from jax.experimental.pallas import tpu as pltpu

_NEG_INF = -1e9


def _round_up(a, b):
    return (a + b - 1) // b * b


def _make_bigram_kernel(tile_n, vp, compute_loss, write_logits):
    """Builds the per-tile kernel.

    Ref order (inputs then outputs):
      x_ids          VMEM (tile_n, 1) int32
      [y_ids]        VMEM (tile_n, 1) int32             (if compute_loss)
      table          VMEM (vp, vp)    f32, resident across the grid
      [logits_out]   VMEM (tile_n, vp) f32              (if write_logits)
      [loss_out]     VMEM (tile_n, 1) f32 per-row CE    (if compute_loss)
    """

    def kernel(*refs):
        pos = 0
        x_ref = refs[pos]; pos += 1
        y_ref = None
        if compute_loss:
            y_ref = refs[pos]; pos += 1
        table_ref = refs[pos]; pos += 1
        logits_ref = None
        if write_logits:
            logits_ref = refs[pos]; pos += 1
        loss_ref = refs[pos] if compute_loss else None

        ids = x_ref[...]                                          # (tile_n, 1)
        lane = lax.broadcasted_iota(jnp.int32, (tile_n, vp), 1)   # (tile_n, vp)

        # Embedding row-gather for the whole tile in one MXU pass:
        #   one_hot[r, v] = (ids[r] == v);  logits = one_hot @ table
        # precision=HIGHEST keeps the gathered f32 rows exact (no bf16 trunc).
        one_hot = (lane == ids).astype(jnp.float32)
        logits = jnp.dot(one_hot, table_ref[...],
                         preferred_element_type=jnp.float32,
                         precision=lax.Precision.HIGHEST)         # (tile_n, vp)

        if write_logits:
            logits_ref[...] = logits

        if compute_loss:
            tgt = y_ref[...]                                      # (tile_n, 1)
            # Row-wise logsumexp; padded vocab lanes hold -1e9 -> exp ~ 0.
            m = jnp.max(logits, axis=-1, keepdims=True)
            e = jnp.exp(logits - m)
            lse = m + jnp.log(jnp.sum(e, axis=-1, keepdims=True))
            tgt_logit = jnp.sum(jnp.where(lane == tgt, logits, 0.0),
                                axis=-1, keepdims=True)
            # Per-row CE.  Rows past N (pure padding in the last tile) fall in
            # the masked region of the partial output block -> never hit HBM.
            loss_ref[...] = lse - tgt_logit

    return kernel


@functools.partial(
    jax.jit, static_argnames=("has_targets", "want_logits", "max_tile_rows"))
def _bigram_pallas(table, x, y, has_targets, want_logits, max_tile_rows):
    assert has_targets or want_logits
    B, T = x.shape
    V = table.shape[0]
    N = B * T

    vp = _round_up(V, 128)                       # lane-dense vocab

    # Big row tiles amortize the ~0.35us/grid-step overhead; cap the logits
    # block at ~4 MiB so double-buffered blocks + resident table + temporaries
    # stay well inside scoped VMEM on v5e/v6e/v7x.
    rows_cap_vmem = max(8, ((4 * 1024 * 1024) // (vp * 4)) // 8 * 8)
    tile_n = min(_round_up(max(max_tile_rows, 8), 8),
                 rows_cap_vmem,
                 _round_up(N, 8))
    num_tiles = -(-N // tile_n)
    n_pad = num_tiles * tile_n

    # Pad the table: extra columns get -1e9 (suppressed by softmax/CE);
    # extra rows are never selected (token ids < V).
    table_p = jnp.full((vp, vp), _NEG_INF, dtype=jnp.float32)
    table_p = table_p.at[:V, :V].set(table.astype(jnp.float32))

    x_flat = jnp.zeros((n_pad, 1), jnp.int32).at[:N, 0].set(
        x.reshape(N).astype(jnp.int32))

    ids_spec = pl.BlockSpec((tile_n, 1), lambda i: (i, 0))
    table_spec = pl.BlockSpec((vp, vp), lambda i: (0, 0))        # VMEM-resident
    # Output blocks are (tile_n, vp) over an (N, V) array: edge columns/rows
    # are masked at writeback -> no wrapper-side slice of padded logits.
    logits_spec = pl.BlockSpec((tile_n, vp), lambda i: (i, 0))
    loss_spec = pl.BlockSpec((tile_n, 1), lambda i: (i, 0))      # per-row CE

    logits_blk = tile_n * vp * 4
    table_bytes = vp * vp * 4
    vmem_limit = int(min(max(2 * table_bytes + 8 * logits_blk + (2 << 20),
                             32 * 1024 * 1024),
                         48 * 1024 * 1024))      # stays under v7x 64 MiB VMEM

    compiler_params = pltpu.CompilerParams(
        # Tiles are independent (disjoint logits rows, per-row losses) -> safe
        # to shard across v7x's two TensorCores; no-op on v5e/v6e.
        dimension_semantics=("parallel",),
        vmem_limit_bytes=vmem_limit,
    )

    kernel = _make_bigram_kernel(tile_n, vp, has_targets, want_logits)

    if has_targets:
        y_flat = jnp.zeros((n_pad, 1), jnp.int32).at[:N, 0].set(
            y.reshape(N).astype(jnp.int32))
        if want_logits:
            out_shape = (jax.ShapeDtypeStruct((N, V), jnp.float32),
                         jax.ShapeDtypeStruct((N, 1), jnp.float32))
            out_specs = [logits_spec, loss_spec]
        else:
            out_shape = jax.ShapeDtypeStruct((N, 1), jnp.float32)
            out_specs = loss_spec
        res = pl.pallas_call(
            kernel,
            out_shape=out_shape,
            grid_spec=pltpu.PrefetchScalarGridSpec(
                num_scalar_prefetch=0,
                grid=(num_tiles,),
                in_specs=[ids_spec, ids_spec, table_spec],
                out_specs=out_specs),
            compiler_params=compiler_params,
        )(x_flat, y_flat, table_p)
        if want_logits:
            logits, per_row = res
        else:
            logits, per_row = None, res
        loss = jnp.sum(per_row) / N
        return logits, loss

    logits = pl.pallas_call(
        kernel,
        out_shape=jax.ShapeDtypeStruct((N, V), jnp.float32),
        grid_spec=pltpu.PrefetchScalarGridSpec(
            num_scalar_prefetch=0,
            grid=(num_tiles,),
            in_specs=[ids_spec, table_spec],
            out_specs=logits_spec),
        compiler_params=compiler_params,
    )(x_flat, table_p)
    return logits, None


def bigram_forward(table, x, y=None, *, max_tile_rows=2048):
    """Mirrors BigramLanguageModel.forward.

    Returns (yhat, loss):
      y is None -> yhat shape (B, T, V), loss None
      else      -> yhat shape (B*T, V),  loss scalar (mean cross-entropy)
    """
    B, T = x.shape
    V = table.shape[0]
    logits, loss = _bigram_pallas(table, x, y, y is not None, True,
                                  max_tile_rows)
    if y is None:
        # Leading-dim split of a contiguous array: free (bitcast) reshape.
        return logits.reshape(B, T, V), None
    return logits, loss


def bigram_loss(table, x, y, *, max_tile_rows=2048):
    """Training-step fast path: mean CE loss only, no logits HBM writeback."""
    _, loss = _bigram_pallas(table, x, y, True, False, max_tile_rows)
    return loss


def _reference_forward(table, x, y):
    """Pure-JAX reference for correctness checking."""
    B, T = x.shape
    logits = table[x]                                   # (B, T, V)
    yhat = logits.reshape(B * T, -1)
    yf = y.reshape(B * T)
    lse = jax.nn.logsumexp(yhat, axis=-1)
    tgt = jnp.take_along_axis(yhat, yf[:, None], axis=-1)[:, 0]
    loss = jnp.mean(lse - tgt)
    return yhat, loss


# TODO(synk): generate() (torch.multinomial sampling loop) is host-side control
# flow outside forward(); not implemented as a kernel.

if __name__ == "__main__":
    key = jax.random.PRNGKey(0)
    k_tab, k_x, k_y = jax.random.split(key, 3)

    V = 65            # char-level vocab (exercises lane padding 65 -> 128)
    B, T = 2, 8       # batch_size, block_size

    # nn.Embedding default init: N(0, 1)
    table = jax.random.normal(k_tab, (V, V), dtype=jnp.float32)
    x = jax.random.randint(k_x, (B, T), 0, V, dtype=jnp.int32)
    y = jax.random.randint(k_y, (B, T), 0, V, dtype=jnp.int32)

    # With targets: (B*T, V) logits + scalar loss
    yhat, loss = bigram_forward(table, x, y)
    yhat = jax.block_until_ready(yhat)
    loss = jax.block_until_ready(loss)

    # Without targets: (B, T, V) logits, loss None (CE path skipped entirely)
    yhat_nl, loss_nl = bigram_forward(table, x, None)
    yhat_nl = jax.block_until_ready(yhat_nl)

    # Loss-only specialization (no logits writeback)
    loss_only = jax.block_until_ready(bigram_loss(table, x, y))

    # Correctness vs pure-JAX reference
    ref_yhat, ref_loss = _reference_forward(table, x, y)
    assert yhat.shape == (B * T, V)
    assert yhat_nl.shape == (B, T, V)
    assert loss_nl is None
    assert jnp.allclose(yhat, ref_yhat, atol=1e-5, rtol=1e-5)
    assert jnp.allclose(yhat_nl.reshape(B * T, V), ref_yhat, atol=1e-5, rtol=1e-5)
    assert jnp.allclose(loss, ref_loss, atol=1e-5, rtol=1e-5)
    assert jnp.allclose(loss_only, ref_loss, atol=1e-5, rtol=1e-5)

    # Multi-tile + row-padding path: N=80 with 32-row tiles -> 3 tiles, last
    # output block partially masked (exercises edge masking and megacore-safe
    # per-row losses).
    B2, T2 = 2, 40
    x2 = jax.random.randint(jax.random.PRNGKey(1), (B2, T2), 0, V, jnp.int32)
    y2 = jax.random.randint(jax.random.PRNGKey(2), (B2, T2), 0, V, jnp.int32)
    yhat2, loss2 = bigram_forward(table, x2, y2, max_tile_rows=32)
    yhat2 = jax.block_until_ready(yhat2)
    loss2 = jax.block_until_ready(loss2)
    ref_yhat2, ref_loss2 = _reference_forward(table, x2, y2)
    assert jnp.allclose(yhat2, ref_yhat2, atol=1e-5, rtol=1e-5)
    assert jnp.allclose(loss2, ref_loss2, atol=1e-5, rtol=1e-5)

    print("KERNEL_OK")
</pallas_src>

<mosaic_0001>
module attributes {stable_mosaic.version = 11 : i64} {
  func.func @kernel(%arg0: i32, %arg1: memref<16x1xi32, #tpu.memory_space<vmem>>, %arg2: memref<16x1xi32, #tpu.memory_space<vmem>>, %arg3: memref<128x128xf32, #tpu.memory_space<vmem>>, %arg4: memref<16x128xf32, #tpu.memory_space<vmem>>, %arg5: memref<16x1xf32, #tpu.memory_space<vmem>>) attributes {dimension_semantics = [#tpu.dimension_semantics<parallel>], iteration_bounds = array<i64: 1>, scalar_prefetch = 0 : i64, scratch_operands = 0 : i64, tpu.core_type = #tpu.core_type<tc>, window_params = [{transform_indices = @transform_0, window_bounds = array<i64: 16, 1>}, {transform_indices = @transform_1, window_bounds = array<i64: 16, 1>}, {pipeline_mode = #tpu.pipeline_mode<synchronous>, transform_indices = @transform_2, window_bounds = array<i64: 128, 128>}, {transform_indices = @transform_3, window_bounds = array<i64: 16, 128>}, {transform_indices = @transform_4, window_bounds = array<i64: 16, 1>}]} {
    %c0 = arith.constant 0 : index
    %c0_0 = arith.constant 0 : index
    %0 = vector.load %arg1[%c0, %c0_0] : memref<16x1xi32, #tpu.memory_space<vmem>>, vector<16x1xi32>
    %1 = tpu.iota {dimensions = array<i32: 1>} : vector<16x128xi32>
    %2 = vector.broadcast %0 : vector<16x1xi32> to vector<16x128xi32>
    %3 = arith.cmpi eq, %1, %2 : vector<16x128xi32>
    %4 = arith.extui %3 : vector<16x128xi1> to vector<16x128xi32>
    %5 = arith.sitofp %4 : vector<16x128xi32> to vector<16x128xf32>
    %c0_1 = arith.constant 0 : index
    %c0_2 = arith.constant 0 : index
    %6 = vector.load %arg3[%c0_1, %c0_2] : memref<128x128xf32, #tpu.memory_space<vmem>>, vector<128x128xf32>
    %cst = arith.constant dense<0.000000e+00> : vector<16x128xf32>
    %7 = tpu.matmul %5, %6, %cst {dimension_numbers = #tpu.dot_dimension_numbers<[1], [0], [0], [1], [0, 0, 1, 1], [], []>, precision = #tpu.contract_precision<fp32>} : vector<16x128xf32>, vector<128x128xf32>, vector<16x128xf32> -> vector<16x128xf32>
    %c0_3 = arith.constant 0 : index
    %c0_4 = arith.constant 0 : index
    %8 = vector.load %arg4[%c0_3, %c0_4] : memref<16x128xf32, #tpu.memory_space<vmem>>, vector<16x128xf32>
    tpu.vector_store %arg4[%c0_3, %c0_4], %7 {strides = array<i32>} : memref<16x128xf32, #tpu.memory_space<vmem>>, vector<16x128xf32>,
    %c0_5 = arith.constant 0 : index
    %c0_6 = arith.constant 0 : index
    %9 = vector.load %arg2[%c0_5, %c0_6] : memref<16x1xi32, #tpu.memory_space<vmem>>, vector<16x1xi32>
    %cst_7 = arith.constant dense<0xFF800000> : vector<16xf32>
    %10 = vector.multi_reduction <maximumf>, %7, %cst_7 [1] : vector<16x128xf32> to vector<16xf32>
    %11 = vector.shape_cast %10 : vector<16xf32> to vector<16x1xf32>
    %12 = vector.broadcast %11 : vector<16x1xf32> to vector<16x128xf32>
    %13 = arith.subf %7, %12 : vector<16x128xf32>
    %14 = math.exp %13 : vector<16x128xf32>
    %cst_8 = arith.constant dense<0.000000e+00> : vector<16xf32>
    %15 = vector.multi_reduction <add>, %14, %cst_8 [1] : vector<16x128xf32> to vector<16xf32>
    %16 = vector.shape_cast %15 : vector<16xf32> to vector<16x1xf32>
    %17 = math.log %16 : vector<16x1xf32>
    %18 = arith.addf %11, %17 : vector<16x1xf32>
    %19 = vector.broadcast %9 : vector<16x1xi32> to vector<16x128xi32>
    %20 = arith.cmpi eq, %1, %19 : vector<16x128xi32>
    %cst_9 = arith.constant 0.000000e+00 : f32
    %21 = vector.broadcast %cst_9 : f32 to vector<16x128xf32>
    %22 = arith.select %20, %7, %21 : vector<16x128xi1>, vector<16x128xf32>
    %cst_10 = arith.constant dense<0.000000e+00> : vector<16xf32>
    %23 = vector.multi_reduction <add>, %22, %cst_10 [1] : vector<16x128xf32> to vector<16xf32>
    %24 = vector.shape_cast %23 : vector<16xf32> to vector<16x1xf32>
    %25 = arith.subf %18, %24 : vector<16x1xf32>
    %c0_11 = arith.constant 0 : index
    %c0_12 = arith.constant 0 : index
    %26 = vector.load %arg5[%c0_11, %c0_12] : memref<16x1xf32, #tpu.memory_space<vmem>>, vector<16x1xf32>
    tpu.vector_store %arg5[%c0_11, %c0_12], %25 {strides = array<i32>} : memref<16x1xf32, #tpu.memory_space<vmem>>, vector<16x1xf32>,
    return
  }
  func.func @transform_0(%arg0: i32) -> (i32, i32) {
    %c0_i32 = arith.constant 0 : i32
    %c0_i32_0 = arith.constant 0 : i32
    return %arg0, %c0_i32 : i32, i32
  }
  func.func @transform_1(%arg0: i32) -> (i32, i32) {
    %c0_i32 = arith.constant 0 : i32
    %c0_i32_0 = arith.constant 0 : i32
    return %arg0, %c0_i32 : i32, i32
  }
  func.func @transform_2(%arg0: i32) -> (i32, i32) {
    %c0_i32 = arith.constant 0 : i32
    %c0_i32_0 = arith.constant 0 : i32
    %c0_i32_1 = arith.constant 0 : i32
    return %c0_i32, %c0_i32_0 : i32, i32
  }
  func.func @transform_3(%arg0: i32) -> (i32, i32) {
    %c0_i32 = arith.constant 0 : i32
    %c0_i32_0 = arith.constant 0 : i32
    return %arg0, %c0_i32 : i32, i32
  }
  func.func @transform_4(%arg0: i32) -> (i32, i32) {
    %c0_i32 = arith.constant 0 : i32
    %c0_i32_0 = arith.constant 0 : i32
    return %arg0, %c0_i32 : i32, i32
  }
}

</mosaic_0001>

<llo_original>
// kernel: _bigram_pallas.1
$region0: #{_bigram_pallas.1}
  #allocation0 [shape = 'u32[]', space=smem, size = 0x4, offset = 0x4, fixed_abs, tag = 'smem constant byte address 0x4 - core index']
  #allocation1 [shape = 'u32[144,128]{1,0:T(1,128)}', space=vmem, size = 0x12000, scoped, tag = 'internal scratch']
  %s0 = inlined_call_operand.vmem [shape: s32[16,1], index: 0, kind: input, shape index: {}]
  %s1 = inlined_call_operand.vmem [shape: s32[16,1], index: 1, kind: input, shape index: {}]
  %s2 = inlined_call_operand.vmem [shape: f32[128,128], index: 2, kind: input, shape index: {}]
  %s3 = inlined_call_operand.hbm [shape: f32[16,65], index: 3, kind: output, shape index: {0}]
  %s4 = inlined_call_operand.vmem [shape: f32[16,1], index: 4, kind: output, shape index: {1}]
  %5 = xla_tuple %s3, %s4
  %s6 = sld [smem:[#allocation0]]
  $region30: #{_bigram_pallas.1} parent=0
    _
  %s8 = ssub.s32 1, %s6
  %s9 = scalar_select 0, %s8, %s6
  $region1: #{_bigram_pallas.1} parent=0
    #allocation2 [shape = 'u8[8192]{0}', space=vmem, size = 0x2000, scoped, tag = 'output window, operand 0, single buffered']
    #allocation3 [shape = 's32[1]{0}', space=sflag, size = 0x4, scoped, tag = 'scoped memory for _bigram_pallas.1']
    %10 = vsyncpa [#allocation3], 0
    // Predicated region
    $region2: #{_bigram_pallas.1} parent=1 // pred_check
      _
    $region3: #{_bigram_pallas.1} parent=1 // pred_check_branch
      %12 = sbr.rel (0) target = $region5
    $region4: #{_bigram_pallas.1} parent=1 // pred_region
      _
    $region5: #{_bigram_pallas.1} parent=1 // pred_fallthru
      _
    // Predicated region
    $region6: #{_bigram_pallas.1} parent=1 // pred_check
      _
    $region7: #{_bigram_pallas.1} parent=1 // pred_check_branch
      %14 = sbr.rel (0) target = $region9
    $region8: #{_bigram_pallas.1} parent=1 // pred_region
      _
    $region9: #{_bigram_pallas.1} parent=1 // pred_fallthru
      _
    // Predicated region
    $region10: #{_bigram_pallas.1} parent=1 // pred_check
      _
    $region11: #{_bigram_pallas.1} parent=1 // pred_check_branch
      %16 = sbr.rel (0) target = $region13
    $region12: #{_bigram_pallas.1} parent=1 // pred_region
      _
    $region13: #{_bigram_pallas.1} parent=1 // pred_fallthru
      _
    %v17 = vld [vmem:[%s0] sm:$0xff]
    %v18 = vld [vmem:[%s0 + $0x8] sm:$0xff]
    %v19 = vlaneseq
    %v20 = vand.u32 %v19, 127
    %21 = vset.pattern.permute.xlu0 0
    %22 = vperm.xlu0 %21, %v17
    %v23 = vpop.permute.xlu0 %22
    %24 = vset.pattern.permute.xlu0 0
    %25 = vperm.xlu0 %24, %v18
    %v26 = vpop.permute.xlu0 %25
    %vm27 = vcmp.eq.s32.totalorder %v20, %v23
    %vm28 = vcmp.eq.s32.totalorder %v20, %v26
    %v29 = vsel %vm27, 1, 0
    %v30 = vsel %vm28, 1, 0
    %v31 = vcvt.s32.f32 %v29
    %v32 = vcvt.s32.f32 %v30
    %v33 = vld [vmem:[%s2] sm:$0xff]
    %v34 = vld [vmem:[%s2 + $0x8] sm:$0xff]
    %v35 = vld [vmem:[%s2 + $0x10] sm:$0xff]
    %v36 = vld [vmem:[%s2 + $0x18] sm:$0xff]
    %v37 = vld [vmem:[%s2 + $0x20] sm:$0xff]
    %v38 = vld [vmem:[%s2 + $0x28] sm:$0xff]
    %v39 = vld [vmem:[%s2 + $0x30] sm:$0xff]
    %v40 = vld [vmem:[%s2 + $0x38] sm:$0xff]
    %v41 = vld [vmem:[%s2 + $0x40] sm:$0xff]
    %v42 = vld [vmem:[%s2 + $0x48] sm:$0xff]
    %v43 = vld [vmem:[%s2 + $0x50] sm:$0xff]
    %v44 = vld [vmem:[%s2 + $0x58] sm:$0xff]
    %v45 = vld [vmem:[%s2 + $0x60] sm:$0xff]
    %v46 = vld [vmem:[%s2 + $0x68] sm:$0xff]
    %v47 = vld [vmem:[%s2 + $0x70] sm:$0xff]
    %v48 = vld [vmem:[%s2 + $0x78] sm:$0xff]
    %49 = vmatprep.subr.mxu0 0.0
    %v50 = vand.u32 %v33, 4294901760
    %51 = vmatpush1.msra.mxu0 %v50
    %52 = vmatprep.subr.mxu0 0.0
    %v53 = vand.u32 %v34, 4294901760
    %54 = vmatpush1.msra.mxu0 %v53
    %55 = vmatprep.subr.mxu0 0.0
    %v56 = vand.u32 %v35, 4294901760
    %57 = vmatpush1.msra.mxu0 %v56
    %58 = vmatprep.subr.mxu0 0.0
    %v59 = vand.u32 %v36, 4294901760
    %60 = vmatpush1.msra.mxu0 %v59
    %61 = vmatprep.subr.mxu0 0.0
    %v62 = vand.u32 %v37, 4294901760
    %63 = vmatpush1.msra.mxu0 %v62
    %64 = vmatprep.subr.mxu0 0.0
    %v65 = vand.u32 %v38, 4294901760
    %66 = vmatpush1.msra.mxu0 %v65
    %67 = vmatprep.subr.mxu0 0.0
    %v68 = vand.u32 %v39, 4294901760
    %69 = vmatpush1.msra.mxu0 %v68
    %70 = vmatprep.subr.mxu0 0.0
    %v71 = vand.u32 %v40, 4294901760
    %72 = vmatpush1.msra.mxu0 %v71
    %73 = vmatprep.subr.mxu0 0.0
    %v74 = vand.u32 %v41, 4294901760
    %75 = vmatpush1.msra.mxu0 %v74
    %76 = vmatprep.subr.mxu0 0.0
    %v77 = vand.u32 %v42, 4294901760
    %78 = vmatpush1.msra.mxu0 %v77
    %79 = vmatprep.subr.mxu0 0.0
    %v80 = vand.u32 %v43, 4294901760
    %81 = vmatpush1.msra.mxu0 %v80
    %82 = vmatprep.subr.mxu0 0.0
    %v83 = vand.u32 %v44, 4294901760
    %84 = vmatpush1.msra.mxu0 %v83
    %85 = vmatprep.subr.mxu0 0.0
    %v86 = vand.u32 %v45, 4294901760
    %87 = vmatpush1.msra.mxu0 %v86
    %88 = vmatprep.subr.mxu0 0.0
    %v89 = vand.u32 %v46, 4294901760
    %90 = vmatpush1.msra.mxu0 %v89
    %91 = vmatprep.subr.mxu0 0.0
    %v92 = vand.u32 %v47, 4294901760
    %93 = vmatpush1.msra.mxu0 %v92
    %94 = vmatprep.subr.mxu0 0.0
    %v95 = vand.u32 %v48, 4294901760
    %96 = vmatpush1.msra.mxu0 %v95
    %97 = vmatprep.subr.mxu0 0.0
    %98 = vmatpush1.msra.mxu0 0.0
    %99 = vmatprep.subr.mxu0 0.0
    %100 = vmatpush1.msra.mxu0 0.0
    %101 = vmatprep.subr.mxu0 0.0
    %102 = vmatpush1.msra.mxu0 0.0
    %103 = vmatprep.subr.mxu0 0.0
    %104 = vmatpush1.msra.mxu0 0.0
    %105 = vmatprep.subr.mxu0 0.0
    %106 = vmatpush1.msra.mxu0 0.0
    %107 = vmatprep.subr.mxu0 0.0
    %108 = vmatpush1.msra.mxu0 0.0
    %109 = vmatprep.subr.mxu0 0.0
    %110 = vmatpush1.msra.mxu0 0.0
    %111 = vmatprep.subr.mxu0 0.0
    %112 = vmatpush1.msra.mxu0 0.0
    %113 = vmatprep.subr.mxu0 0.0
    %114 = vmatpush1.msra.mxu0 0.0
    %115 = vmatprep.subr.mxu0 0.0
    %116 = vmatpush1.msra.mxu0 0.0
    %117 = vmatprep.subr.mxu0 0.0
    %118 = vmatpush1.msra.mxu0 0.0
    %119 = vmatprep.subr.mxu0 0.0
    %120 = vmatpush1.msra.mxu0 0.0
    %121 = vmatprep.subr.mxu0 0.0
    %122 = vmatpush1.msra.mxu0 0.0
    %123 = vmatprep.subr.mxu0 0.0
    %124 = vmatpush1.msra.mxu0 0.0
    %125 = vmatprep.subr.mxu0 0.0
    %126 = vmatpush1.msra.mxu0 0.0
    %127 = vmatprep.subr.mxu0 0.0
    %128 = vmatpush1.msra.mxu0 0.0
    %129 = vmatprep.mubr.f32.mxu0 0.0
    %v130 = vand.u32 %v31, 4294901760
    %v131 = vsub.f32 %v31, %v130
    %v132 = vand.u32 %v131, 4294901760
    %v133 = vsub.f32 %v131, %v132
    %v134 = vand.u32 %v133, 4294901760
    %135 = vmatmul.mubr.f32.gmra.mrb[0].mxu0 %v134
    %v136 = vpop.f32.mrb[0].mxu0
    %v137 = vadd.f32 0.0, %v136
    %v138 = vpop.f32.mrb[0].mxu0
    %139 = vmatprep.mubr.f32.mxu0 0.0
    %v140 = vand.u32 %v32, 4294901760
    %v141 = vsub.f32 %v32, %v140
    %v142 = vand.u32 %v141, 4294901760
    %v143 = vsub.f32 %v141, %v142
    %v144 = vand.u32 %v143, 4294901760
    %145 = vmatmul.mubr.f32.gmra.mrb[0].mxu0 %v144
    %v146 = vpop.f32.mrb[0].mxu0
    %v147 = vadd.f32 0.0, %v146
    %v148 = vpop.f32.mrb[0].mxu0
    %149 = vdwg.mxu0
    %150 = vmatprep.subr.mxu0 0.0
    %v151 = vand.u32 %v33, 4294901760
    %v152 = vsub.f32 %v33, %v151
    %v153 = vand.u32 %v152, 4294901760
    %v154 = vsub.f32 %v152, %v153
    %v155 = vand.u32 %v154, 4294901760
    %156 = vmatpush1.msra.mxu0 %v155
    %157 = vmatprep.subr.mxu0 0.0
    %v158 = vand.u32 %v34, 4294901760
    %v159 = vsub.f32 %v34, %v158
    %v160 = vand.u32 %v159, 4294901760
    %v161 = vsub.f32 %v159, %v160
    %v162 = vand.u32 %v161, 4294901760
    %163 = vmatpush1.msra.mxu0 %v162
    %164 = vmatprep.subr.mxu0 0.0
    %v165 = vand.u32 %v35, 4294901760
    %v166 = vsub.f32 %v35, %v165
    %v167 = vand.u32 %v166, 4294901760
    %v168 = vsub.f32 %v166, %v167
    %v169 = vand.u32 %v168, 4294901760
    %170 = vmatpush1.msra.mxu0 %v169
    %171 = vmatprep.subr.mxu0 0.0
    %v172 = vand.u32 %v36, 4294901760
    %v173 = vsub.f32 %v36, %v172
    %v174 = vand.u32 %v173, 4294901760
    %v175 = vsub.f32 %v173, %v174
    %v176 = vand.u32 %v175, 4294901760
    %177 = vmatpush1.msra.mxu0 %v176
    %178 = vmatprep.subr.mxu0 0.0
    %v179 = vand.u32 %v37, 4294901760
    %v180 = vsub.f32 %v37, %v179
    %v181 = vand.u32 %v180, 4294901760
    %v182 = vsub.f32 %v180, %v181
    %v183 = vand.u32 %v182, 4294901760
    %184 = vmatpush1.msra.mxu0 %v183
    %185 = vmatprep.subr.mxu0 0.0
    %v186 = vand.u32 %v38, 4294901760
    %v187 = vsub.f32 %v38, %v186
    %v188 = vand.u32 %v187, 4294901760
    %v189 = vsub.f32 %v187, %v188
    %v190 = vand.u32 %v189, 4294901760
    %191 = vmatpush1.msra.mxu0 %v190
    %192 = vmatprep.subr.mxu0 0.0
    %v193 = vand.u32 %v39, 4294901760
    %v194 = vsub.f32 %v39, %v193
    %v195 = vand.u32 %v194, 4294901760
    %v196 = vsub.f32 %v194, %v195
    %v197 = vand.u32 %v196, 4294901760
    %198 = vmatpush1.msra.mxu0 %v197
    %199 = vmatprep.subr.mxu0 0.0
    %v200 = vand.u32 %v40, 4294901760
    %v201 = vsub.f32 %v40, %v200
    %v202 = vand.u32 %v201, 4294901760
    %v203 = vsub.f32 %v201, %v202
    %v204 = vand.u32 %v203, 4294901760
    %205 = vmatpush1.msra.mxu0 %v204
    %206 = vmatprep.subr.mxu0 0.0
    %v207 = vand.u32 %v41, 4294901760
    %v208 = vsub.f32 %v41, %v207
    %v209 = vand.u32 %v208, 4294901760
    %v210 = vsub.f32 %v208, %v209
    %v211 = vand.u32 %v210, 4294901760
    %212 = vmatpush1.msra.mxu0 %v211
    %213 = vmatprep.subr.mxu0 0.0
    %v214 = vand.u32 %v42, 4294901760
    %v215 = vsub.f32 %v42, %v214
    %v216 = vand.u32 %v215, 4294901760
    %v217 = vsub.f32 %v215, %v216
    %v218 = vand.u32 %v217, 4294901760
    %219 = vmatpush1.msra.mxu0 %v218
    %220 = vmatprep.subr.mxu0 0.0
    %v221 = vand.u32 %v43, 4294901760
    %v222 = vsub.f32 %v43, %v221
    %v223 = vand.u32 %v222, 4294901760
    %v224 = vsub.f32 %v222, %v223
    %v225 = vand.u32 %v224, 4294901760
    %226 = vmatpush1.msra.mxu0 %v225
    %227 = vmatprep.subr.mxu0 0.0
    %v228 = vand.u32 %v44, 4294901760
    %v229 = vsub.f32 %v44, %v228
    %v230 = vand.u32 %v229, 4294901760
    %v231 = vsub.f32 %v229, %v230
    %v232 = vand.u32 %v231, 4294901760
    %233 = vmatpush1.msra.mxu0 %v232
    %234 = vmatprep.subr.mxu0 0.0
    %v235 = vand.u32 %v45, 4294901760
    %v236 = vsub.f32 %v45, %v235
    %v237 = vand.u32 %v236, 4294901760
    %v238 = vsub.f32 %v236, %v237
    %v239 = vand.u32 %v238, 4294901760
    %240 = vmatpush1.msra.mxu0 %v239
    %241 = vmatprep.subr.mxu0 0.0
    %v242 = vand.u32 %v46, 4294901760
    %v243 = vsub.f32 %v46, %v242
    %v244 = vand.u32 %v243, 4294901760
    %v245 = vsub.f32 %v243, %v244
    %v246 = vand.u32 %v245, 4294901760
    %247 = vmatpush1.msra.mxu0 %v246
    %248 = vmatprep.subr.mxu0 0.0
    %v249 = vand.u32 %v47, 4294901760
    %v250 = vsub.f32 %v47, %v249
    %v251 = vand.u32 %v250, 4294901760
    %v252 = vsub.f32 %v250, %v251
    %v253 = vand.u32 %v252, 4294901760
    %254 = vmatpush1.msra.mxu0 %v253
    %255 = vmatprep.subr.mxu0 0.0
    %v256 = vand.u32 %v48, 4294901760
    %v257 = vsub.f32 %v48, %v256
    %v258 = vand.u32 %v257, 4294901760
    %v259 = vsub.f32 %v257, %v258
    %v260 = vand.u32 %v259, 4294901760
    %261 = vmatpush1.msra.mxu0 %v260
    %262 = vmatprep.subr.mxu0 0.0
    %263 = vmatpush1.msra.mxu0 0.0
    %264 = vmatprep.subr.mxu0 0.0
    %265 = vmatpush1.msra.mxu0 0.0
    %266 = vmatprep.subr.mxu0 0.0
    %267 = vmatpush1.msra.mxu0 0.0
    %268 = vmatprep.subr.mxu0 0.0
    %269 = vmatpush1.msra.mxu0 0.0
    %270 = vmatprep.subr.mxu0 0.0
    %271 = vmatpush1.msra.mxu0 0.0
    %272 = vmatprep.subr.mxu0 0.0
    %273 = vmatpush1.msra.mxu0 0.0
    %274 = vmatprep.subr.mxu0 0.0
    %275 = vmatpush1.msra.mxu0 0.0
    %276 = vmatprep.subr.mxu0 0.0
    %277 = vmatpush1.msra.mxu0 0.0
    %278 = vmatprep.subr.mxu0 0.0
    %279 = vmatpush1.msra.mxu0 0.0
    %280 = vmatprep.subr.mxu0 0.0
    %281 = vmatpush1.msra.mxu0 0.0
    %282 = vmatprep.subr.mxu0 0.0
    %283 = vmatpush1.msra.mxu0 0.0
    %284 = vmatprep.subr.mxu0 0.0
    %285 = vmatpush1.msra.mxu0 0.0
    %286 = vmatprep.subr.mxu0 0.0
    %287 = vmatpush1.msra.mxu0 0.0
    %288 = vmatprep.subr.mxu0 0.0
    %289 = vmatpush1.msra.mxu0 0.0
    %290 = vmatprep.subr.mxu0 0.0
    %291 = vmatpush1.msra.mxu0 0.0
    %292 = vmatprep.subr.mxu0 0.0
    %293 = vmatpush1.msra.mxu0 0.0
    %294 = vmatprep.mubr.f32.mxu0 0.0
    %v295 = vand.u32 %v31, 4294901760
    %296 = vmatmul.mubr.f32.gmra.mrb[0].mxu0 %v295
    %v297 = vpop.f32.mrb[0].mxu0
    %v298 = vadd.f32 %v137, %v297
    %v299 = vpop.f32.mrb[0].mxu0
    %300 = vmatprep.mubr.f32.mxu0 0.0
    %v301 = vand.u32 %v32, 4294901760
    %302 = vmatmul.mubr.f32.gmra.mrb[0].mxu0 %v301
    %v303 = vpop.f32.mrb[0].mxu0
    %v304 = vadd.f32 %v147, %v303
    %v305 = vpop.f32.mrb[0].mxu0
    %306 = vdwg.mxu0
    %307 = vmatprep.subr.mxu0 0.0
    %v308 = vand.u32 %v33, 4294901760
    %v309 = vsub.f32 %v33, %v308
    %310 = vmatpush1.msra.mxu0 %v309
    %311 = vmatprep.subr.mxu0 0.0
    %v312 = vand.u32 %v34, 4294901760
    %v313 = vsub.f32 %v34, %v312
    %314 = vmatpush1.msra.mxu0 %v313
    %315 = vmatprep.subr.mxu0 0.0
    %v316 = vand.u32 %v35, 4294901760
    %v317 = vsub.f32 %v35, %v316
    %318 = vmatpush1.msra.mxu0 %v317
    %319 = vmatprep.subr.mxu0 0.0
    %v320 = vand.u32 %v36, 4294901760
    %v321 = vsub.f32 %v36, %v320
    %322 = vmatpush1.msra.mxu0 %v321
    %323 = vmatprep.subr.mxu0 0.0
    %v324 = vand.u32 %v37, 4294901760
    %v325 = vsub.f32 %v37, %v324
    %326 = vmatpush1.msra.mxu0 %v325
    %327 = vmatprep.subr.mxu0 0.0
    %v328 = vand.u32 %v38, 4294901760
    %v329 = vsub.f32 %v38, %v328
    %330 = vmatpush1.msra.mxu0 %v329
    %331 = vmatprep.subr.mxu0 0.0
    %v332 = vand.u32 %v39, 4294901760
    %v333 = vsub.f32 %v39, %v332
    %334 = vmatpush1.msra.mxu0 %v333
    %335 = vmatprep.subr.mxu0 0.0
    %v336 = vand.u32 %v40, 4294901760
    %v337 = vsub.f32 %v40, %v336
    %338 = vmatpush1.msra.mxu0 %v337
    %339 = vmatprep.subr.mxu0 0.0
    %v340 = vand.u32 %v41, 4294901760
    %v341 = vsub.f32 %v41, %v340
    %342 = vmatpush1.msra.mxu0 %v341
    %343 = vmatprep.subr.mxu0 0.0
    %v344 = vand.u32 %v42, 4294901760
    %v345 = vsub.f32 %v42, %v344
    %346 = vmatpush1.msra.mxu0 %v345
    %347 = vmatprep.subr.mxu0 0.0
    %v348 = vand.u32 %v43, 4294901760
    %v349 = vsub.f32 %v43, %v348
    %350 = vmatpush1.msra.mxu0 %v349
    %351 = vmatprep.subr.mxu0 0.0
    %v352 = vand.u32 %v44, 4294901760
    %v353 = vsub.f32 %v44, %v352
    %354 = vmatpush1.msra.mxu0 %v353
    %355 = vmatprep.subr.mxu0 0.0
    %v356 = vand.u32 %v45, 4294901760
    %v357 = vsub.f32 %v45, %v356
    %358 = vmatpush1.msra.mxu0 %v357
    %359 = vmatprep.subr.mxu0 0.0
    %v360 = vand.u32 %v46, 4294901760
    %v361 = vsub.f32 %v46, %v360
    %362 = vmatpush1.msra.mxu0 %v361
    %363 = vmatprep.subr.mxu0 0.0
    %v364 = vand.u32 %v47, 4294901760
    %v365 = vsub.f32 %v47, %v364
    %366 = vmatpush1.msra.mxu0 %v365
    %367 = vmatprep.subr.mxu0 0.0
    %v368 = vand.u32 %v48, 4294901760
    %v369 = vsub.f32 %v48, %v368
    %370 = vmatpush1.msra.mxu0 %v369
    %371 = vmatprep.subr.mxu0 0.0
    %372 = vmatpush1.msra.mxu0 0.0
    %373 = vmatprep.subr.mxu0 0.0
    %374 = vmatpush1.msra.mxu0 0.0
    %375 = vmatprep.subr.mxu0 0.0
    %376 = vmatpush1.msra.mxu0 0.0
    %377 = vmatprep.subr.mxu0 0.0
    %378 = vmatpush1.msra.mxu0 0.0
    %379 = vmatprep.subr.mxu0 0.0
    %380 = vmatpush1.msra.mxu0 0.0
    %381 = vmatprep.subr.mxu0 0.0
    %382 = vmatpush1.msra.mxu0 0.0
    %383 = vmatprep.subr.mxu0 0.0
    %384 = vmatpush1.msra.mxu0 0.0
    %385 = vmatprep.subr.mxu0 0.0
    %386 = vmatpush1.msra.mxu0 0.0
    %387 = vmatprep.subr.mxu0 0.0
    %388 = vmatpush1.msra.mxu0 0.0
    %389 = vmatprep.subr.mxu0 0.0
    %390 = vmatpush1.msra.mxu0 0.0
    %391 = vmatprep.subr.mxu0 0.0
    %392 = vmatpush1.msra.mxu0 0.0
    %393 = vmatprep.subr.mxu0 0.0
    %394 = vmatpush1.msra.mxu0 0.0
    %395 = vmatprep.subr.mxu0 0.0
    %396 = vmatpush1.msra.mxu0 0.0
    %397 = vmatprep.subr.mxu0 0.0
    %398 = vmatpush1.msra.mxu0 0.0
    %399 = vmatprep.subr.mxu0 0.0
    %400 = vmatpush1.msra.mxu0 0.0
    %401 = vmatprep.subr.mxu0 0.0
    %402 = vmatpush1.msra.mxu0 0.0
    %403 = vmatprep.mubr.f32.mxu0 0.0
    %v404 = vand.u32 %v31, 4294901760
    %v405 = vsub.f32 %v31, %v404
    %406 = vmatmul.mubr.f32.gmra.mrb[0].mxu0 %v405
    %v407 = vpop.f32.mrb[0].mxu0
    %v408 = vadd.f32 %v298, %v407
    %v409 = vpop.f32.mrb[0].mxu0
    %410 = vmatprep.mubr.f32.mxu0 0.0
    %v411 = vand.u32 %v32, 4294901760
    %v412 = vsub.f32 %v32, %v411
    %413 = vmatmul.mubr.f32.gmra.mrb[0].mxu0 %v412
    %v414 = vpop.f32.mrb[0].mxu0
    %v415 = vadd.f32 %v304, %v414
    %v416 = vpop.f32.mrb[0].mxu0
    %417 = vdwg.mxu0
    %418 = vmatprep.subr.mxu0 0.0
    %v419 = vand.u32 %v33, 4294901760
    %420 = vmatpush1.msra.mxu0 %v419
    %421 = vmatprep.subr.mxu0 0.0
    %v422 = vand.u32 %v34, 4294901760
    %423 = vmatpush1.msra.mxu0 %v422
    %424 = vmatprep.subr.mxu0 0.0
    %v425 = vand.u32 %v35, 4294901760
    %426 = vmatpush1.msra.mxu0 %v425
    %427 = vmatprep.subr.mxu0 0.0
    %v428 = vand.u32 %v36, 4294901760
    %429 = vmatpush1.msra.mxu0 %v428
    %430 = vmatprep.subr.mxu0 0.0
    %v431 = vand.u32 %v37, 4294901760
    %432 = vmatpush1.msra.mxu0 %v431
    %433 = vmatprep.subr.mxu0 0.0
    %v434 = vand.u32 %v38, 4294901760
    %435 = vmatpush1.msra.mxu0 %v434
    %436 = vmatprep.subr.mxu0 0.0
    %v437 = vand.u32 %v39, 4294901760
    %438 = vmatpush1.msra.mxu0 %v437
    %439 = vmatprep.subr.mxu0 0.0
    %v440 = vand.u32 %v40, 4294901760
    %441 = vmatpush1.msra.mxu0 %v440
    %442 = vmatprep.subr.mxu0 0.0
    %v443 = vand.u32 %v41, 4294901760
    %444 = vmatpush1.msra.mxu0 %v443
    %445 = vmatprep.subr.mxu0 0.0
    %v446 = vand.u32 %v42, 4294901760
    %447 = vmatpush1.msra.mxu0 %v446
    %448 = vmatprep.subr.mxu0 0.0
    %v449 = vand.u32 %v43, 4294901760
    %450 = vmatpush1.msra.mxu0 %v449
    %451 = vmatprep.subr.mxu0 0.0
    %v452 = vand.u32 %v44, 4294901760
    %453 = vmatpush1.msra.mxu0 %v452
    %454 = vmatprep.subr.mxu0 0.0
    %v455 = vand.u32 %v45, 4294901760
    %456 = vmatpush1.msra.mxu0 %v455
    %457 = vmatprep.subr.mxu0 0.0
    %v458 = vand.u32 %v46, 4294901760
    %459 = vmatpush1.msra.mxu0 %v458
    %460 = vmatprep.subr.mxu0 0.0
    %v461 = vand.u32 %v47, 4294901760
    %462 = vmatpush1.msra.mxu0 %v461
    %463 = vmatprep.subr.mxu0 0.0
    %v464 = vand.u32 %v48, 4294901760
    %465 = vmatpush1.msra.mxu0 %v464
    %466 = vmatprep.subr.mxu0 0.0
    %467 = vmatpush1.msra.mxu0 0.0
    %468 = vmatprep.subr.mxu0 0.0
    %469 = vmatpush1.msra.mxu0 0.0
    %470 = vmatprep.subr.mxu0 0.0
    %471 = vmatpush1.msra.mxu0 0.0
    %472 = vmatprep.subr.mxu0 0.0
    %473 = vmatpush1.msra.mxu0 0.0
    %474 = vmatprep.subr.mxu0 0.0
    %475 = vmatpush1.msra.mxu0 0.0
    %476 = vmatprep.subr.mxu0 0.0
    %477 = vmatpush1.msra.mxu0 0.0
    %478 = vmatprep.subr.mxu0 0.0
    %479 = vmatpush1.msra.mxu0 0.0
    %480 = vmatprep.subr.mxu0 0.0
    %481 = vmatpush1.msra.mxu0 0.0
    %482 = vmatprep.subr.mxu0 0.0
    %483 = vmatpush1.msra.mxu0 0.0
    %484 = vmatprep.subr.mxu0 0.0
    %485 = vmatpush1.msra.mxu0 0.0
    %486 = vmatprep.subr.mxu0 0.0
    %487 = vmatpush1.msra.mxu0 0.0
    %488 = vmatprep.subr.mxu0 0.0
    %489 = vmatpush1.msra.mxu0 0.0
    %490 = vmatprep.subr.mxu0 0.0
    %491 = vmatpush1.msra.mxu0 0.0
    %492 = vmatprep.subr.mxu0 0.0
    %493 = vmatpush1.msra.mxu0 0.0
    %494 = vmatprep.subr.mxu0 0.0
    %495 = vmatpush1.msra.mxu0 0.0
    %496 = vmatprep.subr.mxu0 0.0
    %497 = vmatpush1.msra.mxu0 0.0
    %498 = vmatprep.mubr.f32.mxu0 0.0
    %v499 = vand.u32 %v31, 4294901760
    %v500 = vsub.f32 %v31, %v499
    %v501 = vand.u32 %v500, 4294901760
    %502 = vmatmul.mubr.f32.gmra.mrb[0].mxu0 %v501
    %v503 = vpop.f32.mrb[0].mxu0
    %v504 = vadd.f32 %v408, %v503
    %v505 = vpop.f32.mrb[0].mxu0
    %506 = vmatprep.mubr.f32.mxu0 0.0
    %v507 = vand.u32 %v32, 4294901760
    %v508 = vsub.f32 %v32, %v507
    %v509 = vand.u32 %v508, 4294901760
    %510 = vmatmul.mubr.f32.gmra.mrb[0].mxu0 %v509
    %v511 = vpop.f32.mrb[0].mxu0
    %v512 = vadd.f32 %v415, %v511
    %v513 = vpop.f32.mrb[0].mxu0
    %514 = vdwg.mxu0
    %515 = vmatprep.subr.mxu0 0.0
    %v516 = vand.u32 %v33, 4294901760
    %v517 = vsub.f32 %v33, %v516
    %v518 = vand.u32 %v517, 4294901760
    %519 = vmatpush1.msra.mxu0 %v518
    %520 = vmatprep.subr.mxu0 0.0
    %v521 = vand.u32 %v34, 4294901760
    %v522 = vsub.f32 %v34, %v521
    %v523 = vand.u32 %v522, 4294901760
    %524 = vmatpush1.msra.mxu0 %v523
    %525 = vmatprep.subr.mxu0 0.0
    %v526 = vand.u32 %v35, 4294901760
    %v527 = vsub.f32 %v35, %v526
    %v528 = vand.u32 %v527, 4294901760
    %529 = vmatpush1.msra.mxu0 %v528
    %530 = vmatprep.subr.mxu0 0.0
    %v531 = vand.u32 %v36, 4294901760
    %v532 = vsub.f32 %v36, %v531
    %v533 = vand.u32 %v532, 4294901760
    %534 = vmatpush1.msra.mxu0 %v533
    %535 = vmatprep.subr.mxu0 0.0
    %v536 = vand.u32 %v37, 4294901760
    %v537 = vsub.f32 %v37, %v536
    %v538 = vand.u32 %v537, 4294901760
    %539 = vmatpush1.msra.mxu0 %v538
    %540 = vmatprep.subr.mxu0 0.0
    %v541 = vand.u32 %v38, 4294901760
    %v542 = vsub.f32 %v38, %v541
    %v543 = vand.u32 %v542, 4294901760
    %544 = vmatpush1.msra.mxu0 %v543
    %545 = vmatprep.subr.mxu0 0.0
    %v546 = vand.u32 %v39, 4294901760
    %v547 = vsub.f32 %v39, %v546
    %v548 = vand.u32 %v547, 4294901760
    %549 = vmatpush1.msra.mxu0 %v548
    %550 = vmatprep.subr.mxu0 0.0
    %v551 = vand.u32 %v40, 4294901760
    %v552 = vsub.f32 %v40, %v551
    %v553 = vand.u32 %v552, 4294901760
    %554 = vmatpush1.msra.mxu0 %v553
    %555 = vmatprep.subr.mxu0 0.0
    %v556 = vand.u32 %v41, 4294901760
    %v557 = vsub.f32 %v41, %v556
    %v558 = vand.u32 %v557, 4294901760
    %559 = vmatpush1.msra.mxu0 %v558
    %560 = vmatprep.subr.mxu0 0.0
    %v561 = vand.u32 %v42, 4294901760
    %v562 = vsub.f32 %v42, %v561
    %v563 = vand.u32 %v562, 4294901760
    %564 = vmatpush1.msra.mxu0 %v563
    %565 = vmatprep.subr.mxu0 0.0
    %v566 = vand.u32 %v43, 4294901760
    %v567 = vsub.f32 %v43, %v566
    %v568 = vand.u32 %v567, 4294901760
    %569 = vmatpush1.msra.mxu0 %v568
    %570 = vmatprep.subr.mxu0 0.0
    %v571 = vand.u32 %v44, 4294901760
    %v572 = vsub.f32 %v44, %v571
    %v573 = vand.u32 %v572, 4294901760
    %574 = vmatpush1.msra.mxu0 %v573
    %575 = vmatprep.subr.mxu0 0.0
    %v576 = vand.u32 %v45, 4294901760
    %v577 = vsub.f32 %v45, %v576
    %v578 = vand.u32 %v577, 4294901760
    %579 = vmatpush1.msra.mxu0 %v578
    %580 = vmatprep.subr.mxu0 0.0
    %v581 = vand.u32 %v46, 4294901760
    %v582 = vsub.f32 %v46, %v581
    %v583 = vand.u32 %v582, 4294901760
    %584 = vmatpush1.msra.mxu0 %v583
    %585 = vmatprep.subr.mxu0 0.0
    %v586 = vand.u32 %v47, 4294901760
    %v587 = vsub.f32 %v47, %v586
    %v588 = vand.u32 %v587, 4294901760
    %589 = vmatpush1.msra.mxu0 %v588
    %590 = vmatprep.subr.mxu0 0.0
    %v591 = vand.u32 %v48, 4294901760
    %v592 = vsub.f32 %v48, %v591
    %v593 = vand.u32 %v592, 4294901760
    %594 = vmatpush1.msra.mxu0 %v593
    %595 = vmatprep.subr.mxu0 0.0
    %596 = vmatpush1.msra.mxu0 0.0
    %597 = vmatprep.subr.mxu0 0.0
    %598 = vmatpush1.msra.mxu0 0.0
    %599 = vmatprep.subr.mxu0 0.0
    %600 = vmatpush1.msra.mxu0 0.0
    %601 = vmatprep.subr.mxu0 0.0
    %602 = vmatpush1.msra.mxu0 0.0
    %603 = vmatprep.subr.mxu0 0.0
    %604 = vmatpush1.msra.mxu0 0.0
    %605 = vmatprep.subr.mxu0 0.0
    %606 = vmatpush1.msra.mxu0 0.0
    %607 = vmatprep.subr.mxu0 0.0
    %608 = vmatpush1.msra.mxu0 0.0
    %609 = vmatprep.subr.mxu0 0.0
    %610 = vmatpush1.msra.mxu0 0.0
    %611 = vmatprep.subr.mxu0 0.0
    %612 = vmatpush1.msra.mxu0 0.0
    %613 = vmatprep.subr.mxu0 0.0
    %614 = vmatpush1.msra.mxu0 0.0
    %615 = vmatprep.subr.mxu0 0.0
    %616 = vmatpush1.msra.mxu0 0.0
    %617 = vmatprep.subr.mxu0 0.0
    %618 = vmatpush1.msra.mxu0 0.0
    %619 = vmatprep.subr.mxu0 0.0
    %620 = vmatpush1.msra.mxu0 0.0
    %621 = vmatprep.subr.mxu0 0.0
    %622 = vmatpush1.msra.mxu0 0.0
    %623 = vmatprep.subr.mxu0 0.0
    %624 = vmatpush1.msra.mxu0 0.0
    %625 = vmatprep.subr.mxu0 0.0
    %626 = vmatpush1.msra.mxu0 0.0
    %627 = vmatprep.mubr.f32.mxu0 0.0
    %v628 = vand.u32 %v31, 4294901760
    %629 = vmatmul.mubr.f32.gmra.mrb[0].mxu0 %v628
    %v630 = vpop.f32.mrb[0].mxu0
    %v631 = vadd.f32 %v504, %v630
    %v632 = vpop.f32.mrb[0].mxu0
    %633 = vmatprep.mubr.f32.mxu0 0.0
    %v634 = vand.u32 %v32, 4294901760
    %635 = vmatmul.mubr.f32.gmra.mrb[0].mxu0 %v634
    %v636 = vpop.f32.mrb[0].mxu0
    %v637 = vadd.f32 %v512, %v636
    %v638 = vpop.f32.mrb[0].mxu0
    %639 = vdwg.mxu0
    %640 = vmatprep.subr.mxu0 0.0
    %v641 = vand.u32 %v33, 4294901760
    %642 = vmatpush1.msra.mxu0 %v641
    %643 = vmatprep.subr.mxu0 0.0
    %v644 = vand.u32 %v34, 4294901760
    %645 = vmatpush1.msra.mxu0 %v644
    %646 = vmatprep.subr.mxu0 0.0
    %v647 = vand.u32 %v35, 4294901760
    %648 = vmatpush1.msra.mxu0 %v647
    %649 = vmatprep.subr.mxu0 0.0
    %v650 = vand.u32 %v36, 4294901760
    %651 = vmatpush1.msra.mxu0 %v650
    %652 = vmatprep.subr.mxu0 0.0
    %v653 = vand.u32 %v37, 4294901760
    %654 = vmatpush1.msra.mxu0 %v653
    %655 = vmatprep.subr.mxu0 0.0
    %v656 = vand.u32 %v38, 4294901760
    %657 = vmatpush1.msra.mxu0 %v656
    %658 = vmatprep.subr.mxu0 0.0
    %v659 = vand.u32 %v39, 4294901760
    %660 = vmatpush1.msra.mxu0 %v659
    %661 = vmatprep.subr.mxu0 0.0
    %v662 = vand.u32 %v40, 4294901760
    %663 = vmatpush1.msra.mxu0 %v662
    %664 = vmatprep.subr.mxu0 0.0
    %v665 = vand.u32 %v41, 4294901760
    %666 = vmatpush1.msra.mxu0 %v665
    %667 = vmatprep.subr.mxu0 0.0
    %v668 = vand.u32 %v42, 4294901760
    %669 = vmatpush1.msra.mxu0 %v668
    %670 = vmatprep.subr.mxu0 0.0
    %v671 = vand.u32 %v43, 4294901760
    %672 = vmatpush1.msra.mxu0 %v671
    %673 = vmatprep.subr.mxu0 0.0
    %v674 = vand.u32 %v44, 4294901760
    %675 = vmatpush1.msra.mxu0 %v674
    %676 = vmatprep.subr.mxu0 0.0
    %v677 = vand.u32 %v45, 4294901760
    %678 = vmatpush1.msra.mxu0 %v677
    %679 = vmatprep.subr.mxu0 0.0
    %v680 = vand.u32 %v46, 4294901760
    %681 = vmatpush1.msra.mxu0 %v680
    %682 = vmatprep.subr.mxu0 0.0
    %v683 = vand.u32 %v47, 4294901760
    %684 = vmatpush1.msra.mxu0 %v683
    %685 = vmatprep.subr.mxu0 0.0
    %v686 = vand.u32 %v48, 4294901760
    %687 = vmatpush1.msra.mxu0 %v686
    %688 = vmatprep.subr.mxu0 0.0
    %689 = vmatpush1.msra.mxu0 0.0
    %690 = vmatprep.subr.mxu0 0.0
    %691 = vmatpush1.msra.mxu0 0.0
    %692 = vmatprep.subr.mxu0 0.0
    %693 = vmatpush1.msra.mxu0 0.0
    %694 = vmatprep.subr.mxu0 0.0
    %695 = vmatpush1.msra.mxu0 0.0
    %696 = vmatprep.subr.mxu0 0.0
    %697 = vmatpush1.msra.mxu0 0.0
    %698 = vmatprep.subr.mxu0 0.0
    %699 = vmatpush1.msra.mxu0 0.0
    %700 = vmatprep.subr.mxu0 0.0
    %701 = vmatpush1.msra.mxu0 0.0
    %702 = vmatprep.subr.mxu0 0.0
    %703 = vmatpush1.msra.mxu0 0.0
    %704 = vmatprep.subr.mxu0 0.0
    %705 = vmatpush1.msra.mxu0 0.0
    %706 = vmatprep.subr.mxu0 0.0
    %707 = vmatpush1.msra.mxu0 0.0
    %708 = vmatprep.subr.mxu0 0.0
    %709 = vmatpush1.msra.mxu0 0.0
    %710 = vmatprep.subr.mxu0 0.0
    %711 = vmatpush1.msra.mxu0 0.0
    %712 = vmatprep.subr.mxu0 0.0
    %713 = vmatpush1.msra.mxu0 0.0
    %714 = vmatprep.subr.mxu0 0.0
    %715 = vmatpush1.msra.mxu0 0.0
    %716 = vmatprep.subr.mxu0 0.0
    %717 = vmatpush1.msra.mxu0 0.0
    %718 = vmatprep.subr.mxu0 0.0
    %719 = vmatpush1.msra.mxu0 0.0
    %720 = vmatprep.mubr.f32.mxu0 0.0
    %v721 = vand.u32 %v31, 4294901760
    %722 = vmatmul.mubr.f32.gmra.mrb[0].mxu0 %v721
    %v723 = vpop.f32.mrb[0].mxu0
    %v724 = vadd.f32 %v631, %v723
    %v725 = vpop.f32.mrb[0].mxu0
    %726 = vmatprep.mubr.f32.mxu0 0.0
    %v727 = vand.u32 %v32, 4294901760
    %728 = vmatmul.mubr.f32.gmra.mrb[0].mxu0 %v727
    %v729 = vpop.f32.mrb[0].mxu0
    %v730 = vadd.f32 %v637, %v729
    %v731 = vpop.f32.mrb[0].mxu0
    %732 = vdwg.mxu0
    %733 = vst [vmem:[#allocation2] sm:$0xff] %v724
    %734 = vst [vmem:[#allocation2 + $0x8] sm:$0xff] %v730
    %v735 = vld [vmem:[%s1] sm:$0xff]
    %v736 = vld [vmem:[%s1 + $0x8] sm:$0xff]
    %737 = vmax.xlane.f32.xlu0 %v724
    %v738 = vpop.xlane.xlu0 %737
    %739 = vmax.xlane.f32.xlu0 %v730
    %v740 = vpop.xlane.xlu0 %739
    %v741 = vsub.f32 %v724, %v738
    %v742 = vsub.f32 %v730, %v740
    %v743 = vmul.f32 %v741, 1.442695
    %v744 = vpow.pop %v743
    %v745 = vmul.f32 %v742, 1.442695
    %v746 = vpow.pop %v745
    %747 = vadd.xlane.f32.xlu0 %v744
    %v748 = vpop.xlane.xlu0 %747
    %749 = vadd.xlane.f32.xlu0 %v746
    %v750 = vpop.xlane.xlu0 %749
    %v751 = vlog2.pop %v748
    %v752 = vmul.f32 %v751, 0.6931472
    %v753 = vlog2.pop %v750
    %v754 = vmul.f32 %v753, 0.6931472
    %v755 = vadd.f32 %v738, %v752
    %v756 = vadd.f32 %v740, %v754
    %757 = vset.pattern.permute.xlu0 0
    %758 = vperm.xlu0 %757, %v735
    %v759 = vpop.permute.xlu0 %758
    %760 = vset.pattern.permute.xlu0 0
    %761 = vperm.xlu0 %760, %v736
    %v762 = vpop.permute.xlu0 %761
    %vm763 = vcmp.eq.s32.totalorder %v20, %v759
    %vm764 = vcmp.eq.s32.totalorder %v20, %v762
    %v765 = vsel %vm763, %v724, 0.0
    %v766 = vsel %vm764, %v730, 0.0
    %767 = vadd.xlane.f32.xlu0 %v765
    %v768 = vpop.xlane.xlu0 %767
    %769 = vadd.xlane.f32.xlu0 %v766
    %v770 = vpop.xlane.xlu0 %769
    %v771 = vsub.f32 %v755, %v768
    %v772 = vsub.f32 %v756, %v770
    %vm773 = vcmask 7168
    %774 = vst.msk [vmem:[%s4] sm:$0xff] %vm773, %v771
    %775 = vst.msk [vmem:[%s4 + $0x8] sm:$0xff] %vm773, %v772
    // Predicated region
    $region14: #{_bigram_pallas.1} parent=1 // pred_check
      _
    $region15: #{_bigram_pallas.1} parent=1 // pred_check_branch
      %777 = sbr.rel (0) target = $region17
    $region16: #{_bigram_pallas.1} parent=1 // pred_region
      %s779 = ssub.s32 256, 256
      %780 = vsyncadd [#allocation3], %s779
      %s781 = sshll.u32 [#allocation2], 4
      %s782 = int_to_ptr.vmem [resolvable:$true] %s781
      %787 = dma.vmem_to_hbm [thread:$0]  %s782, 256, %s3, [#allocation3], 128, 128, 8
    $region17: #{_bigram_pallas.1} parent=1 // pred_fallthru
      _
    // Predicated region
    $region18: #{_bigram_pallas.1} parent=1 // pred_check
      _
    $region19: #{_bigram_pallas.1} parent=1 // pred_check_branch
      %789 = sbr.rel (0) target = $region21
    $region20: #{_bigram_pallas.1} parent=1 // pred_region
      _
    $region21: #{_bigram_pallas.1} parent=1 // pred_fallthru
      _
    // Predicated region
    $region22: #{_bigram_pallas.1} parent=1 // pred_check
      _
    $region23: #{_bigram_pallas.1} parent=1 // pred_check_branch
      %791 = sbr.rel (0) target = $region25
    $region24: #{_bigram_pallas.1} parent=1 // pred_region
      %792 = dma.done [#allocation3], 256
    $region25: #{_bigram_pallas.1} parent=1 // pred_fallthru
      _
    // Predicated region
    $region26: #{_bigram_pallas.1} parent=1 // pred_check
      _
    $region27: #{_bigram_pallas.1} parent=1 // pred_check_branch
      %794 = sbr.rel (0) target = $region29
    $region28: #{_bigram_pallas.1} parent=1 // pred_region
      _
    $region29: #{_bigram_pallas.1} parent=1 // pred_fallthru
      _
    %795 = vsyncpa [#allocation3], 1

</llo_original>
